<compile_context>
chip_gen: v5e
topology: v5e:2x2
jax: 0.10.0
libtpu: 0.0.40
codegen_flags: <defaults>
</compile_context>

<pallas_src>
import functools

import jax
import jax.numpy as jnp
from jax.experimental import pallas as pl
from jax.experimental.pallas import tpu as pltpu


def _layernorm_kernel(x_ref, a_ref, b_ref, o_ref, *, eps=1e-6):
    # x_ref: (TR, F) tile of rows; a_ref/b_ref: (1, F) scale / shift.
    x = x_ref[...].astype(jnp.float32)
    f = x.shape[-1]

    mean = jnp.mean(x, axis=-1, keepdims=True)
    diff = x - mean
    # torch.std is unbiased by default -> divide by (N - 1)
    var = jnp.sum(diff * diff, axis=-1, keepdims=True) * (1.0 / jnp.float32(f - 1))
    std = jnp.sqrt(var)

    # Per-row reciprocal on the EUP slot, keeping the VALU stream free.
    inv = pl.reciprocal(std + jnp.float32(eps), approx=False)

    a = a_ref[...].astype(jnp.float32)   # (1, F) broadcasts over rows
    b = b_ref[...].astype(jnp.float32)

    o_ref[...] = (a * diff * inv + b).astype(o_ref.dtype)


def _sublane_multiple(dtype):
    # f32 -> 8 sublanes, bf16/f16 -> 16, int8/fp8 -> 32 (packed-dtype tiling).
    itemsize = jnp.dtype(dtype).itemsize
    return {4: 8, 2: 16, 1: 32}.get(itemsize, 8)


def _choose_row_tile(rows, features, dtype,
                     max_tile=1024, block_bytes_budget=2 * 1024 * 1024):
    """Pick a row tile: sublane-multiple, ~budget bytes per block, <=1024 rows."""
    sub = _sublane_multiple(dtype)
    itemsize = jnp.dtype(dtype).itemsize
    by_vmem = max(sub, block_bytes_budget // (features * itemsize))
    tile = min(max_tile, by_vmem)
    tile = max(sub, (tile // sub) * sub)
    # Never request a block taller than the (sublane-rounded) row count.
    rows_up = ((rows + sub - 1) // sub) * sub
    return min(tile, rows_up)


def layer_norm(x, a_2, b_2, *, eps=1e-6, row_tile=None):
    """LayerNorm over the last axis of x. x may have any rank >= 1."""
    orig_shape = x.shape
    features = orig_shape[-1]
    x2 = x.reshape(-1, features)
    rows = x2.shape[0]

    if row_tile is None:
        row_tile = _choose_row_tile(rows, features, x2.dtype)

    a2d = a_2.reshape(1, features)
    b2d = b_2.reshape(1, features)

    grid = (pl.cdiv(rows, row_tile),)   # ragged last block handled by Pallas

    out = pl.pallas_call(
        functools.partial(_layernorm_kernel, eps=eps),
        out_shape=jax.ShapeDtypeStruct((rows, features), x.dtype),
        grid_spec=pltpu.PrefetchScalarGridSpec(
            num_scalar_prefetch=0,
            grid=grid,
            in_specs=[
                pl.BlockSpec((row_tile, features), lambda i: (i, 0)),
                pl.BlockSpec((1, features), lambda i: (0, 0)),
                pl.BlockSpec((1, features), lambda i: (0, 0)),
            ],
            out_specs=pl.BlockSpec((row_tile, features), lambda i: (i, 0)),
        ),
        compiler_params=pltpu.CompilerParams(
            dimension_semantics=("parallel",),
            vmem_limit_bytes=32 * 1024 * 1024,
        ),
    )(x2, a2d, b2d)

    return out.reshape(orig_shape)


def _reference(x, a_2, b_2, eps=1e-6):
    xf = x.astype(jnp.float32)
    mean = jnp.mean(xf, axis=-1, keepdims=True)
    var = jnp.sum((xf - mean) ** 2, axis=-1, keepdims=True) / (xf.shape[-1] - 1)
    std = jnp.sqrt(var)
    return (a_2.astype(jnp.float32) * (xf - mean) / (std + eps)
            + b_2.astype(jnp.float32)).astype(x.dtype)


if __name__ == "__main__":
    key = jax.random.PRNGKey(0)

    # d_model = 768 throughout SectionOne / EncoderLayer -> lane-dense feature axis.
    batch, seq, hidden = 2, 8, 768
    x = jax.random.normal(key, (batch, seq, hidden), dtype=jnp.float32)

    # Parameter init matching nn.Parameter(torch.ones/zeros(features)).
    a_2 = jnp.ones((hidden,), dtype=jnp.float32)
    b_2 = jnp.zeros((hidden,), dtype=jnp.float32)

    out = jax.block_until_ready(layer_norm(x, a_2, b_2))
    ref = _reference(x, a_2, b_2)
    assert out.shape == x.shape
    assert jnp.allclose(out, ref, atol=1e-5, rtol=1e-5), "mismatch vs reference"

    # Ragged row count (rows not a multiple of the tile / sublane) with a
    # non-trivial affine: exercises the no-host-padding path.
    k1, k2, k3 = jax.random.split(jax.random.PRNGKey(1), 3)
    x_r = jax.random.normal(k1, (3, 5, hidden), dtype=jnp.float32)
    a_r = 1.0 + 0.1 * jax.random.normal(k2, (hidden,), dtype=jnp.float32)
    b_r = 0.1 * jax.random.normal(k3, (hidden,), dtype=jnp.float32)
    out_r = jax.block_until_ready(layer_norm(x_r, a_r, b_r))
    ref_r = _reference(x_r, a_r, b_r)
    assert out_r.shape == x_r.shape
    assert jnp.allclose(out_r, ref_r, atol=1e-5, rtol=1e-5), "ragged mismatch"

    print("KERNEL_OK")
</pallas_src>

<mosaic_0001>
module attributes {stable_mosaic.version = 11 : i64} {
  func.func @_layernorm_kernel(%arg0: i32, %arg1: memref<16x768xf32, #tpu.memory_space<vmem>>, %arg2: memref<1x768xf32, #tpu.memory_space<vmem>>, %arg3: memref<1x768xf32, #tpu.memory_space<vmem>>, %arg4: memref<16x768xf32, #tpu.memory_space<vmem>>) attributes {dimension_semantics = [#tpu.dimension_semantics<parallel>], iteration_bounds = array<i64: 1>, scalar_prefetch = 0 : i64, scratch_operands = 0 : i64, tpu.core_type = #tpu.core_type<tc>, window_params = [{transform_indices = @transform_0, window_bounds = array<i64: 16, 768>}, {pipeline_mode = #tpu.pipeline_mode<synchronous>, transform_indices = @transform_1, window_bounds = array<i64: 1, 768>}, {pipeline_mode = #tpu.pipeline_mode<synchronous>, transform_indices = @transform_2, window_bounds = array<i64: 1, 768>}, {transform_indices = @transform_3, window_bounds = array<i64: 16, 768>}]} {
    %c0 = arith.constant 0 : index
    %c0_0 = arith.constant 0 : index
    %0 = vector.load %arg1[%c0, %c0_0] : memref<16x768xf32, #tpu.memory_space<vmem>>, vector<16x768xf32>
    %cst = arith.constant dense<0.000000e+00> : vector<16xf32>
    %1 = vector.multi_reduction <add>, %0, %cst [1] : vector<16x768xf32> to vector<16xf32>
    %2 = vector.shape_cast %1 : vector<16xf32> to vector<16x1xf32>
    %cst_1 = arith.constant 7.680000e+02 : f32
    %3 = vector.broadcast %cst_1 : f32 to vector<16x1xf32>
    %4 = arith.divf %2, %3 : vector<16x1xf32>
    %5 = vector.broadcast %4 : vector<16x1xf32> to vector<16x768xf32>
    %6 = arith.subf %0, %5 : vector<16x768xf32>
    %7 = arith.mulf %6, %6 : vector<16x768xf32>
    %cst_2 = arith.constant dense<0.000000e+00> : vector<16xf32>
    %8 = vector.multi_reduction <add>, %7, %cst_2 [1] : vector<16x768xf32> to vector<16xf32>
    %9 = vector.shape_cast %8 : vector<16xf32> to vector<16x1xf32>
    %cst_3 = arith.constant 1.000000e+00 : f32
    %cst_4 = arith.constant 7.670000e+02 : f32
    %10 = arith.divf %cst_3, %cst_4 : f32
    %11 = vector.broadcast %10 : f32 to vector<16x1xf32>
    %12 = arith.mulf %9, %11 : vector<16x1xf32>
    %13 = math.sqrt %12 : vector<16x1xf32>
    %cst_5 = arith.constant 9.99999997E-7 : f32
    %14 = vector.broadcast %cst_5 : f32 to vector<16x1xf32>
    %15 = arith.addf %13, %14 : vector<16x1xf32>
    %16 = tpu.reciprocal %15 : vector<16x1xf32> -> vector<16x1xf32>
    %c0_6 = arith.constant 0 : index
    %c0_7 = arith.constant 0 : index
    %17 = vector.load %arg2[%c0_6, %c0_7] : memref<1x768xf32, #tpu.memory_space<vmem>>, vector<1x768xf32>
    %c0_8 = arith.constant 0 : index
    %c0_9 = arith.constant 0 : index
    %18 = vector.load %arg3[%c0_8, %c0_9] : memref<1x768xf32, #tpu.memory_space<vmem>>, vector<1x768xf32>
    %19 = vector.broadcast %17 : vector<1x768xf32> to vector<16x768xf32>
    %20 = arith.mulf %19, %6 : vector<16x768xf32>
    %21 = vector.broadcast %16 : vector<16x1xf32> to vector<16x768xf32>
    %22 = arith.mulf %20, %21 : vector<16x768xf32>
    %23 = vector.broadcast %18 : vector<1x768xf32> to vector<16x768xf32>
    %24 = arith.addf %22, %23 : vector<16x768xf32>
    %c0_10 = arith.constant 0 : index
    %c0_11 = arith.constant 0 : index
    %25 = vector.load %arg4[%c0_10, %c0_11] : memref<16x768xf32, #tpu.memory_space<vmem>>, vector<16x768xf32>
    tpu.vector_store %arg4[%c0_10, %c0_11], %24 {strides = array<i32>} : memref<16x768xf32, #tpu.memory_space<vmem>>, vector<16x768xf32>,
    return
  }
  func.func @transform_0(%arg0: i32) -> (i32, i32) {
    %c0_i32 = arith.constant 0 : i32
    %c0_i32_0 = arith.constant 0 : i32
    return %arg0, %c0_i32 : i32, i32
  }
  func.func @transform_1(%arg0: i32) -> (i32, i32) {
    %c0_i32 = arith.constant 0 : i32
    %c0_i32_0 = arith.constant 0 : i32
    %c0_i32_1 = arith.constant 0 : i32
    return %c0_i32, %c0_i32_0 : i32, i32
  }
  func.func @transform_2(%arg0: i32) -> (i32, i32) {
    %c0_i32 = arith.constant 0 : i32
    %c0_i32_0 = arith.constant 0 : i32
    %c0_i32_1 = arith.constant 0 : i32
    return %c0_i32, %c0_i32_0 : i32, i32
  }
  func.func @transform_3(%arg0: i32) -> (i32, i32) {
    %c0_i32 = arith.constant 0 : i32
    %c0_i32_0 = arith.constant 0 : i32
    return %arg0, %c0_i32 : i32, i32
  }
}

</mosaic_0001>

<llo_original>
// kernel: tpu_custom_call.1
$region0: #{tpu_custom_call.1}
  #allocation0 [shape = 'u32[]', space=smem, size = 0x4, offset = 0x4, fixed_abs, tag = 'smem constant byte address 0x4 - core index']
  #allocation1 [shape = 'u32[72,128]{1,0:T(1,128)}', space=vmem, size = 0x9000, scoped, tag = 'internal scratch']
  %s0 = inlined_call_operand.hbm [shape: f32[16,768], index: 0, kind: input, shape index: {}]
  %s1 = inlined_call_operand.hbm [shape: f32[1,768], index: 1, kind: input, shape index: {}]
  %s2 = inlined_call_operand.hbm [shape: f32[1,768], index: 2, kind: input, shape index: {}]
  %s3 = inlined_call_operand.hbm [shape: f32[16,768], index: 3, kind: output, shape index: {}]
  %s4 = sld [smem:[#allocation0]]
  $region34: #{tpu_custom_call.1} parent=0
    _
  %s6 = ssub.s32 1, %s4
  %s7 = scalar_select 0, %s6, %s4
  $region1: #{tpu_custom_call.1} parent=0
    #allocation2 [shape = 'u8[49152]{0}', space=vmem, size = 0xc000, scoped, tag = 'input window, operand 0, single buffered']
    #allocation3 [shape = 's32[1]{0}', space=sflag, size = 0x4, scoped, tag = 'scoped memory for tpu_custom_call.1']
    #allocation4 [shape = 's32[1]{0}', space=sflag, size = 0x4, scoped, tag = 'scoped memory for tpu_custom_call.1']
    #allocation5 [shape = 'u8[3072]{0}', space=vmem, size = 0xc00, scoped, tag = 'input window, operand 1, single buffered']
    #allocation6 [shape = 's32[1]{0}', space=sflag, size = 0x4, scoped, tag = 'scoped memory for tpu_custom_call.1']
    #allocation7 [shape = 'u8[3072]{0}', space=vmem, size = 0xc00, scoped, tag = 'input window, operand 2, single buffered']
    #allocation8 [shape = 'u8[49152]{0}', space=vmem, size = 0xc000, scoped, tag = 'output window, operand 0, single buffered']
    %8 = vsyncpa [#allocation3], 0
    %9 = vsyncpa [#allocation6], 0
    %10 = vsyncpa [#allocation4], 0
    // Predicated region
    $region2: #{tpu_custom_call.1} parent=1 // pred_check
      _
    $region3: #{tpu_custom_call.1} parent=1 // pred_check_branch
      %12 = sbr.rel (0) target = $region5
    $region4: #{tpu_custom_call.1} parent=1 // pred_region
      %14 = vsyncadd [#allocation3], 0
      %s15 = sshll.u32 %s0, 4
      %s16 = int_to_ptr.hbm [resolvable:$true] %s15
      %s17 = sshll.u32 [#allocation2], 4
      %s18 = int_to_ptr.vmem [resolvable:$true] %s17
      %23 = dma.hbm_to_vmem [thread:$0]  %s16, 1536, %s18, [#allocation3], 768, 768, 48
    $region5: #{tpu_custom_call.1} parent=1 // pred_fallthru
      _
    // Predicated region
    $region6: #{tpu_custom_call.1} parent=1 // pred_check
      _
    $region7: #{tpu_custom_call.1} parent=1 // pred_check_branch
      %25 = sbr.rel (0) target = $region9
    $region8: #{tpu_custom_call.1} parent=1 // pred_region
      %27 = vsyncadd [#allocation6], 0
      %s29 = sshll.u32 %s1, 4
      %s30 = int_to_ptr.hbm [resolvable:$true] %s29
      %s31 = sshll.u32 [#allocation5], 4
      %s32 = int_to_ptr.vmem [resolvable:$true] %s31
      %34 = dma.hbm_to_vmem [thread:$0]  %s30, 96, %s32, [#allocation6]
    $region9: #{tpu_custom_call.1} parent=1 // pred_fallthru
      _
    // Predicated region
    $region10: #{tpu_custom_call.1} parent=1 // pred_check
      _
    $region11: #{tpu_custom_call.1} parent=1 // pred_check_branch
      %36 = sbr.rel (0) target = $region13
    $region12: #{tpu_custom_call.1} parent=1 // pred_region
      %38 = vsyncadd [#allocation6], 0
      %s40 = sshll.u32 %s2, 4
      %s41 = int_to_ptr.hbm [resolvable:$true] %s40
      %s42 = sshll.u32 [#allocation7], 4
      %s43 = int_to_ptr.vmem [resolvable:$true] %s42
      %45 = dma.hbm_to_vmem [thread:$0]  %s41, 96, %s43, [#allocation6]
    $region13: #{tpu_custom_call.1} parent=1 // pred_fallthru
      _
    // Predicated region
    $region14: #{tpu_custom_call.1} parent=1 // pred_check
      _
    $region15: #{tpu_custom_call.1} parent=1 // pred_check_branch
      %47 = sbr.rel (0) target = $region17
    $region16: #{tpu_custom_call.1} parent=1 // pred_region
      %49 = dma.done [#allocation3], 1536
    $region17: #{tpu_custom_call.1} parent=1 // pred_fallthru
      _
    // Predicated region
    $region18: #{tpu_custom_call.1} parent=1 // pred_check
      _
    $region19: #{tpu_custom_call.1} parent=1 // pred_check_branch
      %51 = sbr.rel (0) target = $region21
    $region20: #{tpu_custom_call.1} parent=1 // pred_region
      %53 = dma.done [#allocation6], 96
    $region21: #{tpu_custom_call.1} parent=1 // pred_fallthru
      _
    // Predicated region
    $region22: #{tpu_custom_call.1} parent=1 // pred_check
      _
    $region23: #{tpu_custom_call.1} parent=1 // pred_check_branch
      %55 = sbr.rel (0) target = $region25
    $region24: #{tpu_custom_call.1} parent=1 // pred_region
      %57 = dma.done [#allocation6], 96
    $region25: #{tpu_custom_call.1} parent=1 // pred_fallthru
      _
    %v58 = vld [vmem:[#allocation2] sm:$0xff]
    %v59 = vld [vmem:[#allocation2 + $0x8] sm:$0xff]
    %v60 = vld [vmem:[#allocation2 + $0x10] sm:$0xff]
    %v61 = vld [vmem:[#allocation2 + $0x18] sm:$0xff]
    %v62 = vld [vmem:[#allocation2 + $0x20] sm:$0xff]
    %v63 = vld [vmem:[#allocation2 + $0x28] sm:$0xff]
    %v64 = vld [vmem:[#allocation2 + $0x30] sm:$0xff]
    %v65 = vld [vmem:[#allocation2 + $0x38] sm:$0xff]
    %v66 = vld [vmem:[#allocation2 + $0x40] sm:$0xff]
    %v67 = vld [vmem:[#allocation2 + $0x48] sm:$0xff]
    %v68 = vld [vmem:[#allocation2 + $0x50] sm:$0xff]
    %v69 = vld [vmem:[#allocation2 + $0x58] sm:$0xff]
    %v70 = vadd.f32 %v58, %v59
    %v71 = vadd.f32 %v70, %v60
    %v72 = vadd.f32 %v71, %v61
    %v73 = vadd.f32 %v72, %v62
    %v74 = vadd.f32 %v73, %v63
    %75 = vadd.xlane.f32.xlu0 %v74
    %v76 = vpop.xlane.xlu0 %75
    %v77 = vadd.f32 %v64, %v65
    %v78 = vadd.f32 %v77, %v66
    %v79 = vadd.f32 %v78, %v67
    %v80 = vadd.f32 %v79, %v68
    %v81 = vadd.f32 %v80, %v69
    %82 = vadd.xlane.f32.xlu0 %v81
    %v83 = vpop.xlane.xlu0 %82
    %v84 = vrcp.pop 768.0
    %v85 = vmul.f32 768.0, %v84
    %v86 = vsub.f32 1.0, %v85
    %v87 = vmul.f32 %v84, %v86
    %v88 = vadd.f32 %v84, %v87
    %vm89 = vweird.f32 %v84
    %v90 = vsel %vm89, %v84, %v88
    %v91 = vmul.f32 %v76, %v90
    %v92 = vmul.f32 %v83, %v90
    %v93 = vsub.f32 %v58, %v91
    %v94 = vsub.f32 %v59, %v91
    %v95 = vsub.f32 %v60, %v91
    %v96 = vsub.f32 %v61, %v91
    %v97 = vsub.f32 %v62, %v91
    %v98 = vsub.f32 %v63, %v91
    %v99 = vsub.f32 %v64, %v92
    %v100 = vsub.f32 %v65, %v92
    %v101 = vsub.f32 %v66, %v92
    %v102 = vsub.f32 %v67, %v92
    %v103 = vsub.f32 %v68, %v92
    %v104 = vsub.f32 %v69, %v92
    %v105 = vmul.f32 %v93, %v93
    %v106 = vmul.f32 %v94, %v94
    %v107 = vmul.f32 %v95, %v95
    %v108 = vmul.f32 %v96, %v96
    %v109 = vmul.f32 %v97, %v97
    %v110 = vmul.f32 %v98, %v98
    %v111 = vmul.f32 %v99, %v99
    %v112 = vmul.f32 %v100, %v100
    %v113 = vmul.f32 %v101, %v101
    %v114 = vmul.f32 %v102, %v102
    %v115 = vmul.f32 %v103, %v103
    %v116 = vmul.f32 %v104, %v104
    %v117 = vadd.f32 %v105, %v106
    %v118 = vadd.f32 %v117, %v107
    %v119 = vadd.f32 %v118, %v108
    %v120 = vadd.f32 %v119, %v109
    %v121 = vadd.f32 %v120, %v110
    %122 = vadd.xlane.f32.xlu0 %v121
    %v123 = vpop.xlane.xlu0 %122
    %v124 = vadd.f32 %v111, %v112
    %v125 = vadd.f32 %v124, %v113
    %v126 = vadd.f32 %v125, %v114
    %v127 = vadd.f32 %v126, %v115
    %v128 = vadd.f32 %v127, %v116
    %129 = vadd.xlane.f32.xlu0 %v128
    %v130 = vpop.xlane.xlu0 %129
    %v131 = vmul.f32 %v123, 0.0013037809
    %v132 = vmul.f32 %v130, 0.0013037809
    %v133 = vrsqrt.pop %v131
    %v134 = vmul.f32 %v133, %v131
    %v135 = vmul.f32 %v134, %v133
    %v136 = vmul.f32 0.5, %v135
    %v137 = vsub.f32 1.5, %v136
    %v138 = vmul.f32 %v133, %v137
    %v139 = vmul.f32 %v131, %v138
    %vm140 = vcmp.eq.f32.partialorder %v131, inf
    %v141 = vsel %vm140, %v131, %v139
    %vm142 = vcmp.eq.f32.partialorder %v131, 0.0
    %v143 = vand.u32 %v131, 2147483648
    %v144 = vsel %vm142, %v143, %v141
    %v145 = vrsqrt.pop %v132
    %v146 = vmul.f32 %v145, %v132
    %v147 = vmul.f32 %v146, %v145
    %v148 = vmul.f32 0.5, %v147
    %v149 = vsub.f32 1.5, %v148
    %v150 = vmul.f32 %v145, %v149
    %v151 = vmul.f32 %v132, %v150
    %vm152 = vcmp.eq.f32.partialorder %v132, inf
    %v153 = vsel %vm152, %v132, %v151
    %vm154 = vcmp.eq.f32.partialorder %v132, 0.0
    %v155 = vand.u32 %v132, 2147483648
    %v156 = vsel %vm154, %v155, %v153
    %v157 = vadd.f32 %v144, 1e-06
    %v158 = vadd.f32 %v156, 1e-06
    %v159 = vrcp.pop %v157
    %v160 = vmul.f32 %v157, %v159
    %v161 = vsub.f32 1.0, %v160
    %v162 = vmul.f32 %v159, %v161
    %v163 = vadd.f32 %v159, %v162
    %vm164 = vweird.f32 %v157
    %vm165 = vweird.f32 %v159
    %vm166 = vmor %vm164, %vm165
    %v167 = vsel %vm166, %v159, %v163
    %v168 = vand.u32 2147483647, %v157
    %vm169 = vcmp.eq.f32.partialorder %v168, 8.507059e+37
    %v170 = vand.u32 %v157, 2147483648
    %v171 = vor.u32 1.1754944e-38, %v170
    %v172 = vsel %vm169, %v171, %v167
    %v173 = vrcp.pop %v158
    %v174 = vmul.f32 %v158, %v173
    %v175 = vsub.f32 1.0, %v174
    %v176 = vmul.f32 %v173, %v175
    %v177 = vadd.f32 %v173, %v176
    %vm178 = vweird.f32 %v158
    %vm179 = vweird.f32 %v173
    %vm180 = vmor %vm178, %vm179
    %v181 = vsel %vm180, %v173, %v177
    %v182 = vand.u32 2147483647, %v158
    %vm183 = vcmp.eq.f32.partialorder %v182, 8.507059e+37
    %v184 = vand.u32 %v158, 2147483648
    %v185 = vor.u32 1.1754944e-38, %v184
    %v186 = vsel %vm183, %v185, %v181
    %v187 = vld [vmem:[#allocation5] sm:$0x3f]
    %v188 = vld [vmem:[#allocation7] sm:$0x3f]
    %v190 = vperm.slane %v187, 0
    %v191 = vperm.slane %v187, 1
    %v192 = vperm.slane %v187, 2
    %v193 = vperm.slane %v187, 3
    %v194 = vperm.slane %v187, 4
    %v195 = vperm.slane %v187, 5
    %v202 = vmul.f32 %v190, %v93
    %v203 = vmul.f32 %v191, %v94
    %v204 = vmul.f32 %v192, %v95
    %v205 = vmul.f32 %v193, %v96
    %v206 = vmul.f32 %v194, %v97
    %v207 = vmul.f32 %v195, %v98
    %v208 = vmul.f32 %v190, %v99
    %v209 = vmul.f32 %v191, %v100
    %v210 = vmul.f32 %v192, %v101
    %v211 = vmul.f32 %v193, %v102
    %v212 = vmul.f32 %v194, %v103
    %v213 = vmul.f32 %v195, %v104
    %v214 = vmul.f32 %v202, %v172
    %v215 = vmul.f32 %v203, %v172
    %v216 = vmul.f32 %v204, %v172
    %v217 = vmul.f32 %v205, %v172
    %v218 = vmul.f32 %v206, %v172
    %v219 = vmul.f32 %v207, %v172
    %v220 = vmul.f32 %v208, %v186
    %v221 = vmul.f32 %v209, %v186
    %v222 = vmul.f32 %v210, %v186
    %v223 = vmul.f32 %v211, %v186
    %v224 = vmul.f32 %v212, %v186
    %v225 = vmul.f32 %v213, %v186
    %v227 = vperm.slane %v188, 0
    %v228 = vperm.slane %v188, 1
    %v229 = vperm.slane %v188, 2
    %v230 = vperm.slane %v188, 3
    %v231 = vperm.slane %v188, 4
    %v232 = vperm.slane %v188, 5
    %v239 = vadd.f32 %v214, %v227
    %v240 = vadd.f32 %v215, %v228
    %v241 = vadd.f32 %v216, %v229
    %v242 = vadd.f32 %v217, %v230
    %v243 = vadd.f32 %v218, %v231
    %v244 = vadd.f32 %v219, %v232
    %v245 = vadd.f32 %v220, %v227
    %v246 = vadd.f32 %v221, %v228
    %v247 = vadd.f32 %v222, %v229
    %v248 = vadd.f32 %v223, %v230
    %v249 = vadd.f32 %v224, %v231
    %v250 = vadd.f32 %v225, %v232
    %251 = vst [vmem:[#allocation8] sm:$0xff] %v239
    %252 = vst [vmem:[#allocation8 + $0x8] sm:$0xff] %v240
    %253 = vst [vmem:[#allocation8 + $0x10] sm:$0xff] %v241
    %254 = vst [vmem:[#allocation8 + $0x18] sm:$0xff] %v242
    %255 = vst [vmem:[#allocation8 + $0x20] sm:$0xff] %v243
    %256 = vst [vmem:[#allocation8 + $0x28] sm:$0xff] %v244
    %257 = vst [vmem:[#allocation8 + $0x30] sm:$0xff] %v245
    %258 = vst [vmem:[#allocation8 + $0x38] sm:$0xff] %v246
    %259 = vst [vmem:[#allocation8 + $0x40] sm:$0xff] %v247
    %260 = vst [vmem:[#allocation8 + $0x48] sm:$0xff] %v248
    %261 = vst [vmem:[#allocation8 + $0x50] sm:$0xff] %v249
    %262 = vst [vmem:[#allocation8 + $0x58] sm:$0xff] %v250
    // Predicated region
    $region26: #{tpu_custom_call.1} parent=1 // pred_check
      _
    $region27: #{tpu_custom_call.1} parent=1 // pred_check_branch
      %264 = sbr.rel (0) target = $region29
    $region28: #{tpu_custom_call.1} parent=1 // pred_region
      %266 = vsyncadd [#allocation4], 0
      %s267 = sshll.u32 [#allocation8], 4
      %s268 = int_to_ptr.vmem [resolvable:$true] %s267
      %s269 = sshll.u32 %s3, 4
      %s270 = int_to_ptr.hbm [resolvable:$true] %s269
      %275 = dma.vmem_to_hbm [thread:$0]  %s268, 1536, %s270, [#allocation4], 768, 768, 48
    $region29: #{tpu_custom_call.1} parent=1 // pred_fallthru
      _
    // Predicated region
    $region30: #{tpu_custom_call.1} parent=1 // pred_check
      _
    $region31: #{tpu_custom_call.1} parent=1 // pred_check_branch
      %277 = sbr.rel (0) target = $region33
    $region32: #{tpu_custom_call.1} parent=1 // pred_region
      %279 = dma.done [#allocation4], 1536
    $region33: #{tpu_custom_call.1} parent=1 // pred_fallthru
      _
    %280 = vsyncpa [#allocation3], 1
    %281 = vsyncpa [#allocation6], 1
    %282 = vsyncpa [#allocation4], 1

</llo_original>
